<compile_context>
chip_gen: v5e
topology: v5e:2x2
jax: 0.10.0
libtpu: 0.0.40
codegen_flags: <defaults>
</compile_context>

<pallas_src>
import jax
import jax.numpy as jnp
from jax.experimental import pallas as pl
from jax.experimental.pallas import tpu as pltpu


def _round_up(x, m):
    return ((x + m - 1) // m) * m


def _glu_kernel(x_ref, wg_ref, wa_ref, bg_ref, ba_ref, o_ref,
                acc_gate_ref, acc_gain_ref):
    # x_ref: (tm, tk)   wg_ref/wa_ref: (tk, tn)   bg_ref/ba_ref: (1, tn) f32
    # o_ref: (tm, tn)   acc_*: f32 (tm, tn) VMEM scratch
    k = pl.program_id(2)

    @pl.when(k == 0)
    def _():
        # Fold the bias into the accumulator init (no epilogue adds needed).
        acc_gate_ref[...] = jnp.broadcast_to(bg_ref[...], acc_gate_ref.shape)
        acc_gain_ref[...] = jnp.broadcast_to(ba_ref[...], acc_gain_ref.shape)

    x = x_ref[...]
    acc_gate_ref[...] += jnp.dot(x, wg_ref[...],
                                 preferred_element_type=jnp.float32)
    acc_gain_ref[...] += jnp.dot(x, wa_ref[...],
                                 preferred_element_type=jnp.float32)

    @pl.when(k == pl.num_programs(2) - 1)
    def _():
        gate = acc_gate_ref[...]
        gain = acc_gain_ref[...]
        # sigmoid(g) == 0.5 * (1 + tanh(g / 2))  -> only 2 EUP ops total.
        sig = 0.5 * (1.0 + jnp.tanh(0.5 * gate))
        o_ref[...] = (jnp.tanh(gain) * sig).astype(o_ref.dtype)


def glu_forward(x, w_t, b, *, tm_max=512, tn_max=512, tk_max=2048,
                compute_dtype=jnp.bfloat16):
    """GLU forward.  x: [..., K]; w_t: [K, 2N]; b: [2N] -> [..., N].

    compute_dtype: dtype for the MXU inputs (default bf16); accumulation and
    the tanh/sigmoid epilogue always stay in f32.  Pass None to keep the
    input dtype (e.g. exact f32 reference checks).
    """
    orig_shape = x.shape
    orig_dtype = x.dtype
    k = orig_shape[-1]
    two_n = w_t.shape[-1]
    n = two_n // 2

    x2d = x.reshape(-1, k)
    m = x2d.shape[0]

    # Split the fused weight so the kernel never lane-slices the MXU output.
    w_gate = w_t[:, :n]
    w_gain = w_t[:, n:]
    b_gate = b[:n].astype(jnp.float32).reshape(1, n)
    b_gain = b[n:].astype(jnp.float32).reshape(1, n)

    if compute_dtype is not None:
        x2d = x2d.astype(compute_dtype)
        w_gate = w_gate.astype(compute_dtype)
        w_gain = w_gain.astype(compute_dtype)

    # Tile sizes: sublane-aligned rows, lane-dense (128-multiple) N and K.
    tm = min(tm_max, _round_up(m, 8))
    tn = min(tn_max, _round_up(n, 128))
    tk = min(tk_max, _round_up(k, 128))

    m_pad = _round_up(m, tm)
    n_pad = _round_up(n, tn)
    k_pad = _round_up(k, tk)

    # Megacore (v7x has 2 TensorCores): guarantee >= 2 parallel output tiles.
    # Prefer splitting N (no extra weight re-streaming); fall back to M.
    if m_pad // tm == 1 and n_pad // tn == 1:
        if tn >= 256:
            tn //= 2
        elif tm >= 16:
            tm = _round_up(tm // 2, 8)
        m_pad = _round_up(m, tm)
        n_pad = _round_up(n, tn)

    # Zero-pad so every grid tile is full (padding contributes 0 to the dots;
    # padded output rows/cols are sliced off below).
    if m_pad != m or k_pad != k:
        x2d = jnp.pad(x2d, ((0, m_pad - m), (0, k_pad - k)))
    if k_pad != k or n_pad != n:
        w_gate = jnp.pad(w_gate, ((0, k_pad - k), (0, n_pad - n)))
        w_gain = jnp.pad(w_gain, ((0, k_pad - k), (0, n_pad - n)))
    if n_pad != n:
        b_gate = jnp.pad(b_gate, ((0, 0), (0, n_pad - n)))
        b_gain = jnp.pad(b_gain, ((0, 0), (0, n_pad - n)))

    mt, nt, kt = m_pad // tm, n_pad // tn, k_pad // tk
    grid = (mt, nt, kt)

    # Triple-buffer the weight streams only in the memory-bound small-M regime
    # and only when there are enough sequential weight tiles to benefit.
    use_tri_buffer = (m_pad <= 256) and (nt * kt >= 3) and hasattr(pl, "Buffered")
    w_bufs = 3 if use_tri_buffer else 2
    if use_tri_buffer:
        w_spec_kwargs = {"pipeline_mode": pl.Buffered(3)}
    else:
        w_spec_kwargs = {}

    x_isize = x2d.dtype.itemsize
    w_isize = w_gate.dtype.itemsize
    o_isize = jnp.dtype(orig_dtype).itemsize

    # VMEM footprint of this tiling (pipelined buffers + scratch) -> limit,
    # clamped so it is always valid on v7x (64 MiB physical per TensorCore).
    vmem_need = (2 * tm * tk * x_isize            # x, double-buffered
                 + 2 * w_bufs * tk * tn * w_isize  # W_gate + W_gain
                 + 2 * 2 * tn * 4                  # biases (f32)
                 + 2 * tm * tn * o_isize           # output, double-buffered
                 + 2 * tm * tn * 4)                # two f32 accumulators
    vmem_limit = min(max(int(vmem_need * 1.25) + (2 << 20), 32 << 20), 60 << 20)

    # Scheduler hint; bytes_accessed accounts for re-streaming x per N tile
    # and each weight per M tile.
    cost = pl.CostEstimate(
        flops=2 * m_pad * k_pad * (2 * n_pad),
        transcendentals=2 * m_pad * n_pad,
        bytes_accessed=(m_pad * k_pad * x_isize * nt
                        + 2 * k_pad * n_pad * w_isize * mt
                        + 2 * n_pad * 4 * mt
                        + m_pad * n_pad * o_isize),
    )

    out = pl.pallas_call(
        _glu_kernel,
        out_shape=jax.ShapeDtypeStruct((m_pad, n_pad), orig_dtype),
        grid_spec=pltpu.PrefetchScalarGridSpec(
            num_scalar_prefetch=0,
            grid=grid,
            in_specs=[
                pl.BlockSpec((tm, tk), lambda i, j, kk: (i, kk)),   # x tile
                pl.BlockSpec((tk, tn), lambda i, j, kk: (kk, j),
                             **w_spec_kwargs),                      # W_gate
                pl.BlockSpec((tk, tn), lambda i, j, kk: (kk, j),
                             **w_spec_kwargs),                      # W_gain
                pl.BlockSpec((1, tn), lambda i, j, kk: (0, j)),     # b_gate
                pl.BlockSpec((1, tn), lambda i, j, kk: (0, j)),     # b_gain
            ],
            out_specs=pl.BlockSpec((tm, tn), lambda i, j, kk: (i, j)),
            scratch_shapes=[
                pltpu.VMEM((tm, tn), jnp.float32),   # gate accumulator
                pltpu.VMEM((tm, tn), jnp.float32),   # gain accumulator
            ],
        ),
        compiler_params=pltpu.CompilerParams(
            dimension_semantics=("parallel", "parallel", "arbitrary"),
            vmem_limit_bytes=vmem_limit,
        ),
        cost_estimate=cost,
    )(x2d, w_gate, w_gain, b_gate, b_gain)

    out = out[:m, :n]
    return out.reshape(*orig_shape[:-1], n)


def init_glu_params(key, in_features, out_features, dtype=jnp.float32):
    """Deterministic init matching nn.Linear shapes (weight [2N, K], bias [2N]);
    kaiming-uniform-like bounds.  Returns weight pre-transposed to [K, 2N]."""
    kw, kb = jax.random.split(key)
    fan_in = in_features
    bound_w = (6.0 / fan_in) ** 0.5 / (1.0 + 5.0) ** 0.5  # kaiming_uniform a=sqrt(5)
    bound_b = 1.0 / (fan_in ** 0.5)
    w = jax.random.uniform(kw, (2 * out_features, in_features),
                           minval=-bound_w, maxval=bound_w, dtype=dtype)
    b = jax.random.uniform(kb, (2 * out_features,),
                           minval=-bound_b, maxval=bound_b, dtype=dtype)
    return w.T, b  # pass transposed weight [K, 2N]


if __name__ == "__main__":
    key = jax.random.PRNGKey(0)
    k_x, k_p = jax.random.split(key)

    batch, seq, in_features, out_features = 2, 8, 32, 32
    x = jax.random.normal(k_x, (batch, seq, in_features), dtype=jnp.float32)
    w_t, b = init_glu_params(k_p, in_features, out_features)

    # --- default bf16-MXU path (f32 accumulation + epilogue) ---------------
    out_bf16 = glu_forward(x, w_t, b)
    out_bf16 = jax.block_until_ready(out_bf16)

    # Reference with matched matmul precision (bf16 inputs, f32 accumulate).
    h_ref16 = jnp.matmul(x.astype(jnp.bfloat16), w_t.astype(jnp.bfloat16),
                         preferred_element_type=jnp.float32) + b
    gate16, gain16 = h_ref16[..., :out_features], h_ref16[..., out_features:]
    ref16 = jnp.tanh(gain16) * jax.nn.sigmoid(gate16)
    assert out_bf16.shape == (batch, seq, out_features), out_bf16.shape
    assert jnp.allclose(out_bf16, ref16, atol=2e-3, rtol=2e-3)

    # --- exact f32 path vs pure-JAX reference (same module semantics) ------
    out_f32 = glu_forward(x, w_t, b, compute_dtype=None)
    out_f32 = jax.block_until_ready(out_f32)
    h_ref = x @ w_t + b
    gate_r, gain_r = h_ref[..., :out_features], h_ref[..., out_features:]
    ref = jnp.tanh(gain_r) * jax.nn.sigmoid(gate_r)
    assert jnp.allclose(out_f32, ref, atol=1e-5, rtol=1e-5)

    print("KERNEL_OK")
</pallas_src>

<mosaic_0001>
module attributes {stable_mosaic.version = 11 : i64} {
  func.func @_glu_kernel(%arg0: i32, %arg1: i32, %arg2: i32, %arg3: memref<8x128xbf16, #tpu.memory_space<vmem>>, %arg4: memref<128x128xbf16, #tpu.memory_space<vmem>>, %arg5: memref<128x128xbf16, #tpu.memory_space<vmem>>, %arg6: memref<1x128xf32, #tpu.memory_space<vmem>>, %arg7: memref<1x128xf32, #tpu.memory_space<vmem>>, %arg8: memref<8x128xf32, #tpu.memory_space<vmem>>, %arg9: memref<8x128xf32, #tpu.memory_space<vmem>>, %arg10: memref<8x128xf32, #tpu.memory_space<vmem>>) attributes {dimension_semantics = [#tpu.dimension_semantics<parallel>, #tpu.dimension_semantics<parallel>, #tpu.dimension_semantics<arbitrary>], iteration_bounds = array<i64: 2, 1, 1>, scalar_prefetch = 0 : i64, scratch_operands = 2 : i64, tpu.core_type = #tpu.core_type<tc>, window_params = [{transform_indices = @transform_0, window_bounds = array<i64: 8, 128>}, {transform_indices = @transform_1, window_bounds = array<i64: 128, 128>}, {transform_indices = @transform_2, window_bounds = array<i64: 128, 128>}, {transform_indices = @transform_3, window_bounds = array<i64: 1, 128>}, {transform_indices = @transform_4, window_bounds = array<i64: 1, 128>}, {transform_indices = @transform_5, window_bounds = array<i64: 8, 128>}]} {
    %c0_i32 = arith.constant 0 : i32
    %0 = arith.cmpi eq, %arg2, %c0_i32 : i32
    %1 = arith.extui %0 : i1 to i32
    %c0_i32_0 = arith.constant 0 : i32
    %2 = arith.cmpi ne, %1, %c0_i32_0 : i32
    scf.if %2 {
      %c0_17 = arith.constant 0 : index
      %c0_18 = arith.constant 0 : index
      %17 = vector.load %arg6[%c0_17, %c0_18] : memref<1x128xf32, #tpu.memory_space<vmem>>, vector<1x128xf32>
      %18 = vector.shape_cast %17 : vector<1x128xf32> to vector<1x128xf32>
      %19 = vector.broadcast %18 : vector<1x128xf32> to vector<8x128xf32>
      %c0_19 = arith.constant 0 : index
      %c0_20 = arith.constant 0 : index
      %20 = vector.load %arg9[%c0_19, %c0_20] : memref<8x128xf32, #tpu.memory_space<vmem>>, vector<8x128xf32>
      tpu.vector_store %arg9[%c0_19, %c0_20], %19 {strides = array<i32>} : memref<8x128xf32, #tpu.memory_space<vmem>>, vector<8x128xf32>,
      %c0_21 = arith.constant 0 : index
      %c0_22 = arith.constant 0 : index
      %21 = vector.load %arg7[%c0_21, %c0_22] : memref<1x128xf32, #tpu.memory_space<vmem>>, vector<1x128xf32>
      %22 = vector.shape_cast %21 : vector<1x128xf32> to vector<1x128xf32>
      %23 = vector.broadcast %22 : vector<1x128xf32> to vector<8x128xf32>
      %c0_23 = arith.constant 0 : index
      %c0_24 = arith.constant 0 : index
      %24 = vector.load %arg10[%c0_23, %c0_24] : memref<8x128xf32, #tpu.memory_space<vmem>>, vector<8x128xf32>
      tpu.vector_store %arg10[%c0_23, %c0_24], %23 {strides = array<i32>} : memref<8x128xf32, #tpu.memory_space<vmem>>, vector<8x128xf32>,
    } else {
    }
    %c0 = arith.constant 0 : index
    %c0_1 = arith.constant 0 : index
    %3 = vector.load %arg3[%c0, %c0_1] : memref<8x128xbf16, #tpu.memory_space<vmem>>, vector<8x128xbf16>
    %c0_2 = arith.constant 0 : index
    %c0_3 = arith.constant 0 : index
    %4 = vector.load %arg9[%c0_2, %c0_3] : memref<8x128xf32, #tpu.memory_space<vmem>>, vector<8x128xf32>
    %c0_4 = arith.constant 0 : index
    %c0_5 = arith.constant 0 : index
    %5 = vector.load %arg4[%c0_4, %c0_5] : memref<128x128xbf16, #tpu.memory_space<vmem>>, vector<128x128xbf16>
    %cst = arith.constant dense<0.000000e+00> : vector<8x128xf32>
    %6 = tpu.matmul %3, %5, %cst {dimension_numbers = #tpu.dot_dimension_numbers<[1], [0], [0], [1], [0, 0, 1, 1], [], []>} : vector<8x128xbf16>, vector<128x128xbf16>, vector<8x128xf32> -> vector<8x128xf32>
    %7 = arith.addf %4, %6 : vector<8x128xf32>
    %c0_6 = arith.constant 0 : index
    %c0_7 = arith.constant 0 : index
    %8 = vector.load %arg9[%c0_6, %c0_7] : memref<8x128xf32, #tpu.memory_space<vmem>>, vector<8x128xf32>
    tpu.vector_store %arg9[%c0_6, %c0_7], %7 {strides = array<i32>} : memref<8x128xf32, #tpu.memory_space<vmem>>, vector<8x128xf32>,
    %c0_8 = arith.constant 0 : index
    %c0_9 = arith.constant 0 : index
    %9 = vector.load %arg10[%c0_8, %c0_9] : memref<8x128xf32, #tpu.memory_space<vmem>>, vector<8x128xf32>
    %c0_10 = arith.constant 0 : index
    %c0_11 = arith.constant 0 : index
    %10 = vector.load %arg5[%c0_10, %c0_11] : memref<128x128xbf16, #tpu.memory_space<vmem>>, vector<128x128xbf16>
    %cst_12 = arith.constant dense<0.000000e+00> : vector<8x128xf32>
    %11 = tpu.matmul %3, %10, %cst_12 {dimension_numbers = #tpu.dot_dimension_numbers<[1], [0], [0], [1], [0, 0, 1, 1], [], []>} : vector<8x128xbf16>, vector<128x128xbf16>, vector<8x128xf32> -> vector<8x128xf32>
    %12 = arith.addf %9, %11 : vector<8x128xf32>
    %c0_13 = arith.constant 0 : index
    %c0_14 = arith.constant 0 : index
    %13 = vector.load %arg10[%c0_13, %c0_14] : memref<8x128xf32, #tpu.memory_space<vmem>>, vector<8x128xf32>
    tpu.vector_store %arg10[%c0_13, %c0_14], %12 {strides = array<i32>} : memref<8x128xf32, #tpu.memory_space<vmem>>, vector<8x128xf32>,
    %c0_i32_15 = arith.constant 0 : i32
    %14 = arith.cmpi eq, %arg2, %c0_i32_15 : i32
    %15 = arith.extui %14 : i1 to i32
    %c0_i32_16 = arith.constant 0 : i32
    %16 = arith.cmpi ne, %15, %c0_i32_16 : i32
    scf.if %16 {
      %c0_17 = arith.constant 0 : index
      %c0_18 = arith.constant 0 : index
      %17 = vector.load %arg9[%c0_17, %c0_18] : memref<8x128xf32, #tpu.memory_space<vmem>>, vector<8x128xf32>
      %c0_19 = arith.constant 0 : index
      %c0_20 = arith.constant 0 : index
      %18 = vector.load %arg10[%c0_19, %c0_20] : memref<8x128xf32, #tpu.memory_space<vmem>>, vector<8x128xf32>
      %cst_21 = arith.constant 5.000000e-01 : f32
      %19 = vector.broadcast %cst_21 : f32 to vector<8x128xf32>
      %20 = arith.mulf %19, %17 : vector<8x128xf32>
      %21 = math.tanh %20 : vector<8x128xf32>
      %cst_22 = arith.constant 1.000000e+00 : f32
      %22 = vector.broadcast %cst_22 : f32 to vector<8x128xf32>
      %23 = arith.addf %22, %21 : vector<8x128xf32>
      %cst_23 = arith.constant 5.000000e-01 : f32
      %24 = vector.broadcast %cst_23 : f32 to vector<8x128xf32>
      %25 = arith.mulf %24, %23 : vector<8x128xf32>
      %26 = math.tanh %18 : vector<8x128xf32>
      %27 = arith.mulf %26, %25 : vector<8x128xf32>
      %c0_24 = arith.constant 0 : index
      %c0_25 = arith.constant 0 : index
      %28 = vector.load %arg8[%c0_24, %c0_25] : memref<8x128xf32, #tpu.memory_space<vmem>>, vector<8x128xf32>
      tpu.vector_store %arg8[%c0_24, %c0_25], %27 {strides = array<i32>} : memref<8x128xf32, #tpu.memory_space<vmem>>, vector<8x128xf32>,
    } else {
    }
    return
  }
  func.func @transform_0(%arg0: i32, %arg1: i32, %arg2: i32) -> (i32, i32) {
    %c0_i32 = arith.constant 0 : i32
    return %arg0, %arg2 : i32, i32
  }
  func.func @transform_1(%arg0: i32, %arg1: i32, %arg2: i32) -> (i32, i32) {
    %c0_i32 = arith.constant 0 : i32
    return %arg2, %arg1 : i32, i32
  }
  func.func @transform_2(%arg0: i32, %arg1: i32, %arg2: i32) -> (i32, i32) {
    %c0_i32 = arith.constant 0 : i32
    return %arg2, %arg1 : i32, i32
  }
  func.func @transform_3(%arg0: i32, %arg1: i32, %arg2: i32) -> (i32, i32) {
    %c0_i32 = arith.constant 0 : i32
    %c0_i32_0 = arith.constant 0 : i32
    return %c0_i32, %arg1 : i32, i32
  }
  func.func @transform_4(%arg0: i32, %arg1: i32, %arg2: i32) -> (i32, i32) {
    %c0_i32 = arith.constant 0 : i32
    %c0_i32_0 = arith.constant 0 : i32
    return %c0_i32, %arg1 : i32, i32
  }
  func.func @transform_5(%arg0: i32, %arg1: i32, %arg2: i32) -> (i32, i32) {
    %c0_i32 = arith.constant 0 : i32
    return %arg0, %arg1 : i32, i32
  }
}

</mosaic_0001>

<llo_original>
// kernel: tpu_custom_call.1
$region0: #{tpu_custom_call.1}
  #allocation0 [shape = 'u32[]', space=smem, size = 0x4, offset = 0x4, fixed_abs, tag = 'smem constant byte address 0x4 - core index']
  #allocation1 [shape = 'u32[72,128]{1,0:T(1,128)}', space=vmem, size = 0x9000, scoped, tag = 'internal scratch']
  #allocation2 [shape = 'f32[8,128]{1,0:T(8,128)}', space=vmem, size = 0x1000, scoped, tag = 'scratch operand']
  #allocation3 [shape = 'f32[8,128]{1,0:T(8,128)}', space=vmem, size = 0x1000, scoped, tag = 'scratch operand']
  %s0 = inlined_call_operand.hbm [shape: bf16[16,128], index: 0, kind: input, shape index: {}]
  %s1 = inlined_call_operand.hbm [shape: bf16[128,128], index: 1, kind: input, shape index: {}]
  %s2 = inlined_call_operand.hbm [shape: bf16[128,128], index: 2, kind: input, shape index: {}]
  %s3 = inlined_call_operand.vmem [shape: f32[1,128], index: 3, kind: input, shape index: {}]
  %s4 = inlined_call_operand.vmem [shape: f32[1,128], index: 4, kind: input, shape index: {}]
  %s5 = inlined_call_operand.hbm [shape: f32[16,128], index: 5, kind: output, shape index: {}]
  %s6 = sld [smem:[#allocation0]]
  $region73: #{tpu_custom_call.1} parent=0
    _
  %s8 = ssub.s32 1, %s6
  %s9 = scalar_select 0, %s8, %s6
  $region1: #{tpu_custom_call.1} parent=0
    #allocation4 [shape = 'u8[4096]{0}', space=vmem, size = 0x1000, scoped, tag = 'input window, operand 0']
    #allocation5 [shape = 's32[2]{0}', space=sflag, size = 0x8, scoped, tag = 'scoped memory for tpu_custom_call.1']
    #allocation6 [shape = 's32[2]{0}', space=sflag, size = 0x8, scoped, tag = 'scoped memory for tpu_custom_call.1']
    #allocation7 [shape = 'u8[32768]{0}', space=vmem, size = 0x8000, scoped, tag = 'input window, operand 1, single buffered']
    #allocation8 [shape = 's32[1]{0}', space=sflag, size = 0x4, scoped, tag = 'scoped memory for tpu_custom_call.1']
    #allocation9 [shape = 'u8[32768]{0}', space=vmem, size = 0x8000, scoped, tag = 'input window, operand 2, single buffered']
    #allocation10 [shape = 'u8[8192]{0}', space=vmem, size = 0x2000, scoped, tag = 'output window, operand 0']
    %10 = vsyncpa [#allocation5], 0
    %s11 = scalar_lea.sflag [#allocation5], 1
    %12 = vsyncpa %s11, 0
    %13 = vsyncpa [#allocation8], 0
    %14 = vsyncpa [#allocation6], 0
    %s15 = scalar_lea.sflag [#allocation6], 1
    %16 = vsyncpa %s15, 0
    loop: start=0, step=1, limit=4
    $region2: #{tpu_custom_call.1} parent=1 // loop_pre_header
      _
    $region3: #{tpu_custom_call.1} parent=1 // loop_header
      %s18 = sphi 0, %s22
      %p19 = scmp.ge.s32.totalorder %s18, 4
      %s25 = sphi 0, %s44
      %s26 = sphi 0, %s40
      %s27 = sphi 0, %s36
      %s28 = sphi 0, %s25
      %s29 = sphi 0, %s26
      %s30 = sphi 0, %s27
      %s31 = sphi 0, %s28
      %s32 = sphi 0, %s29
      %s33 = sphi 0, %s30
      %s49 = sphi 0, %s51
      %s52 = sphi 0, %s49
      %s53 = sphi 0, %s52
      %s69 = sphi 0, %s53
      %s77 = sphi 0, %s79
      %s80 = sphi 0, %s77
      %s81 = sphi 0, %s80
      %s97 = sphi 0, %s81
      %s105 = sphi 0, %s107
      %s108 = sphi 0, %s105
      %s109 = sphi 0, %s108
      %s125 = sphi 0, %s109
      %s131 = sphi 0, %s133
      %s134 = sphi 0, %s131
      %s135 = sphi 0, %s134
      %s151 = sphi 0, %s135
      %s157 = sphi 0, %s159
      %s160 = sphi 0, %s157
      %s161 = sphi 0, %s160
      %s177 = sphi 0, %s161
      %s185 = sphi 0, %s187
      %s188 = sphi 0, %s185
      %s189 = sphi 0, %s188
      %s205 = sphi 0, %s189
    $region4: #{tpu_custom_call.1} parent=1 // loop_header_branch
      %21 = sbr.rel (%p19) target = $region8
    $region5: #{tpu_custom_call.1} parent=1 // loop_body
      %s23 = ssub.s32 %s18, 1
      %s24 = ssub.s32 %s18, 2
      %s34 = sadd.s32 1, %s27
      %p35 = scmp.ge.s32.totalorder %s34, 1
      %s36 = scalar_select %p35, 0, %s34
      %s37 = sadd.s32 1, %s26
      %s38 = scalar_select %p35, %s37, %s26
      %p39 = scmp.ge.s32.totalorder %s38, 1
      %s40 = scalar_select %p39, 0, %s38
      %s41 = sadd.s32 1, %s25
      %s42 = scalar_select %p39, %s41, %s25
      %p43 = scmp.ge.s32.totalorder %s42, 2
      %s44 = scalar_select %p43, 0, %s42
      %s45 = ssub.s32 %s25, %s44
      %s46 = ssub.s32 %s27, %s36
      %s47 = sor.u32 %s45, %s46
      %p48 = scmp.eq.s32.totalorder %s47, 0
      %s50 = sadd.s32 %s49, 1
      %s51 = scalar_select %p48, %s49, %s50
      %p54 = pneg %p48
      %p55 = scmp.eq.s32.totalorder %s18, 1
      %p56 = por %p54, %p55
      %p57 = scmp.ne.s32.totalorder %s49, %s52
      %p58 = scmp.eq.s32.totalorder %s18, 0
      %p59 = por %p57, %p58
      %p60 = scmp.ne.s32.totalorder %s49, %s52
      %p61 = scmp.eq.s32.totalorder %s23, 1
      %p62 = por %p60, %p61
      %p63 = scmp.ne.s32.totalorder %s52, %s53
      %p64 = scmp.eq.s32.totalorder %s23, 0
      %p65 = por %p63, %p64
      %p66 = scmp.ne.s32.totalorder %s52, %s53
      %p67 = scmp.eq.s32.totalorder %s24, 1
      %p68 = por %p66, %p67
      %p70 = scmp.ne.s32.totalorder %s53, %s69
      %p71 = scmp.eq.s32.totalorder %s24, 0
      %p72 = por %p70, %p71
      %s73 = ssub.s32 %s27, %s36
      %s74 = ssub.s32 %s26, %s40
      %s75 = sor.u32 %s73, %s74
      %p76 = scmp.eq.s32.totalorder %s75, 0
      %s78 = sadd.s32 %s77, 1
      %s79 = scalar_select %p76, %s77, %s78
      %p82 = pneg %p76
      %p83 = scmp.eq.s32.totalorder %s18, 1
      %p84 = por %p82, %p83
      %p85 = scmp.ne.s32.totalorder %s77, %s80
      %p86 = scmp.eq.s32.totalorder %s18, 0
      %p87 = por %p85, %p86
      %p88 = scmp.ne.s32.totalorder %s77, %s80
      %p89 = scmp.eq.s32.totalorder %s23, 1
      %p90 = por %p88, %p89
      %p91 = scmp.ne.s32.totalorder %s80, %s81
      %p92 = scmp.eq.s32.totalorder %s23, 0
      %p93 = por %p91, %p92
      %p94 = scmp.ne.s32.totalorder %s80, %s81
      %p95 = scmp.eq.s32.totalorder %s24, 1
      %p96 = por %p94, %p95
      %p98 = scmp.ne.s32.totalorder %s81, %s97
      %p99 = scmp.eq.s32.totalorder %s24, 0
      %p100 = por %p98, %p99
      %s101 = ssub.s32 %s27, %s36
      %s102 = ssub.s32 %s26, %s40
      %s103 = sor.u32 %s101, %s102
      %p104 = scmp.eq.s32.totalorder %s103, 0
      %s106 = sadd.s32 %s105, 1
      %s107 = scalar_select %p104, %s105, %s106
      %p110 = pneg %p104
      %p111 = scmp.eq.s32.totalorder %s18, 1
      %p112 = por %p110, %p111
      %p113 = scmp.ne.s32.totalorder %s105, %s108
      %p114 = scmp.eq.s32.totalorder %s18, 0
      %p115 = por %p113, %p114
      %p116 = scmp.ne.s32.totalorder %s105, %s108
      %p117 = scmp.eq.s32.totalorder %s23, 1
      %p118 = por %p116, %p117
      %p119 = scmp.ne.s32.totalorder %s108, %s109
      %p120 = scmp.eq.s32.totalorder %s23, 0
      %p121 = por %p119, %p120
      %p122 = scmp.ne.s32.totalorder %s108, %s109
      %p123 = scmp.eq.s32.totalorder %s24, 1
      %p124 = por %p122, %p123
      %p126 = scmp.ne.s32.totalorder %s109, %s125
      %p127 = scmp.eq.s32.totalorder %s24, 0
      %p128 = por %p126, %p127
      %s129 = ssub.s32 %s26, %s40
      %p130 = scmp.eq.s32.totalorder %s129, 0
      %s132 = sadd.s32 %s131, 1
      %s133 = scalar_select %p130, %s131, %s132
      %p136 = pneg %p130
      %p137 = scmp.eq.s32.totalorder %s18, 1
      %p138 = por %p136, %p137
      %p139 = scmp.ne.s32.totalorder %s131, %s134
      %p140 = scmp.eq.s32.totalorder %s18, 0
      %p141 = por %p139, %p140
      %p142 = scmp.ne.s32.totalorder %s131, %s134
      %p143 = scmp.eq.s32.totalorder %s23, 1
      %p144 = por %p142, %p143
      %p145 = scmp.ne.s32.totalorder %s134, %s135
      %p146 = scmp.eq.s32.totalorder %s23, 0
      %p147 = por %p145, %p146
      %p148 = scmp.ne.s32.totalorder %s134, %s135
      %p149 = scmp.eq.s32.totalorder %s24, 1
      %p150 = por %p148, %p149
      %p152 = scmp.ne.s32.totalorder %s135, %s151
      %p153 = scmp.eq.s32.totalorder %s24, 0
      %p154 = por %p152, %p153
      %s155 = ssub.s32 %s26, %s40
      %p156 = scmp.eq.s32.totalorder %s155, 0
      %s158 = sadd.s32 %s157, 1
      %s159 = scalar_select %p156, %s157, %s158
      %p162 = pneg %p156
      %p163 = scmp.eq.s32.totalorder %s18, 1
      %p164 = por %p162, %p163
      %p165 = scmp.ne.s32.totalorder %s157, %s160
      %p166 = scmp.eq.s32.totalorder %s18, 0
      %p167 = por %p165, %p166
      %p168 = scmp.ne.s32.totalorder %s157, %s160
      %p169 = scmp.eq.s32.totalorder %s23, 1
      %p170 = por %p168, %p169
      %p171 = scmp.ne.s32.totalorder %s160, %s161
      %p172 = scmp.eq.s32.totalorder %s23, 0
      %p173 = por %p171, %p172
      %p174 = scmp.ne.s32.totalorder %s160, %s161
      %p175 = scmp.eq.s32.totalorder %s24, 1
      %p176 = por %p174, %p175
      %p178 = scmp.ne.s32.totalorder %s161, %s177
      %p179 = scmp.eq.s32.totalorder %s24, 0
      %p180 = por %p178, %p179
      %s181 = ssub.s32 %s25, %s44
      %s182 = ssub.s32 %s26, %s40
      %s183 = sor.u32 %s181, %s182
      %p184 = scmp.eq.s32.totalorder %s183, 0
      %s186 = sadd.s32 %s185, 1
      %s187 = scalar_select %p184, %s185, %s186
      %p190 = pneg %p184
      %p191 = scmp.eq.s32.totalorder %s18, 1
      %p192 = por %p190, %p191
      %p193 = scmp.ne.s32.totalorder %s185, %s188
      %p194 = scmp.eq.s32.totalorder %s18, 0
      %p195 = por %p193, %p194
      %p196 = scmp.ne.s32.totalorder %s185, %s188
      %p197 = scmp.eq.s32.totalorder %s23, 1
      %p198 = por %p196, %p197
      %p199 = scmp.ne.s32.totalorder %s188, %s189
      %p200 = scmp.eq.s32.totalorder %s23, 0
      %p201 = por %p199, %p200
      %p202 = scmp.ne.s32.totalorder %s188, %s189
      %p203 = scmp.eq.s32.totalorder %s24, 1
      %p204 = por %p202, %p203
      %p206 = scmp.ne.s32.totalorder %s189, %s205
      %p207 = scmp.eq.s32.totalorder %s24, 0
      %p208 = por %p206, %p207
      %p209 = scmp.le.s32.totalorder 1, %s18
      %p210 = scmp.lt.s32.totalorder %s18, 3
      %p211 = pnand %p209, %p210
      %p212 = pneg %p211
      // Predicated region
      $region9: #{tpu_custom_call.1} parent=5 // pred_check
        _
      $region10: #{tpu_custom_call.1} parent=5 // pred_check_branch
        %214 = sbr.rel (%p211) target = $region12
      $region11: #{tpu_custom_call.1} parent=5 // pred_region
        %s215 = ssub.s32 %s18, 1
        // Predicated region
        $region13: #{tpu_custom_call.1} parent=11 // pred_check
          %p216 = pneg %p93
        $region14: #{tpu_custom_call.1} parent=11 // pred_check_branch
          %218 = sbr.rel (%p216) target = $region16
        $region15: #{tpu_custom_call.1} parent=11 // pred_region
          %s219 = smul.u32 16, %s30
          %221 = vsyncadd [#allocation8], 0
          %s222 = sadd.s32 %s29, %s219
          %s223 = smul.addr %s222, 4
          %s224 = scalar_lea.hbm %s1, %s223
          %s225 = sshll.u32 %s224, 4
          %s226 = int_to_ptr.hbm [resolvable:$true] %s225
          %s227 = sshll.u32 [#allocation7], 4
          %s228 = int_to_ptr.vmem [resolvable:$true] %s227
          %233 = dma.hbm_to_vmem [thread:$0]  %s226, 1024, %s228, [#allocation8], 64, 64, 4
        $region16: #{tpu_custom_call.1} parent=11 // pred_fallthru
          _
        // Predicated region
        $region17: #{tpu_custom_call.1} parent=11 // pred_check
          %p234 = pneg %p121
        $region18: #{tpu_custom_call.1} parent=11 // pred_check_branch
          %236 = sbr.rel (%p234) target = $region20
        $region19: #{tpu_custom_call.1} parent=11 // pred_region
          %s237 = smul.u32 16, %s30
          %239 = vsyncadd [#allocation8], 0
          %s240 = sadd.s32 %s29, %s237
          %s241 = smul.addr %s240, 4
          %s242 = scalar_lea.hbm %s2, %s241
          %s243 = sshll.u32 %s242, 4
          %s244 = int_to_ptr.hbm [resolvable:$true] %s243
          %s245 = sshll.u32 [#allocation9], 4
          %s246 = int_to_ptr.vmem [resolvable:$true] %s245
          %251 = dma.hbm_to_vmem [thread:$0]  %s244, 1024, %s246, [#allocation8], 64, 64, 4
        $region20: #{tpu_custom_call.1} parent=11 // pred_fallthru
          _
        // Predicated region
        $region21: #{tpu_custom_call.1} parent=11 // pred_check
          %p252 = pneg %p147
        $region22: #{tpu_custom_call.1} parent=11 // pred_check_branch
          %254 = sbr.rel (%p252) target = $region24
        $region23: #{tpu_custom_call.1} parent=11 // pred_region
          %p255 = scmp.lt.s32.totalorder %s29, 0
          %s256 = scalar_select %p255, %s29, 0
          %s257 = scalar_lea.vmem %s3, %s256
        $region24: #{tpu_custom_call.1} parent=11 // pred_fallthru
          _
        // Predicated region
        $region25: #{tpu_custom_call.1} parent=11 // pred_check
          %p258 = pneg %p173
        $region26: #{tpu_custom_call.1} parent=11 // pred_check_branch
          %260 = sbr.rel (%p258) target = $region28
        $region27: #{tpu_custom_call.1} parent=11 // pred_region
          %p261 = scmp.lt.s32.totalorder %s29, 0
          %s262 = scalar_select %p261, %s29, 0
          %s263 = scalar_lea.vmem %s4, %s262
        $region28: #{tpu_custom_call.1} parent=11 // pred_fallthru
          _
      $region12: #{tpu_custom_call.1} parent=5 // pred_fallthru
        _
      %p264 = scmp.lt.s32.totalorder %s18, 2
      // Predicated region
      $region29: #{tpu_custom_call.1} parent=5 // pred_check
        %p265 = pneg %p264
      $region30: #{tpu_custom_call.1} parent=5 // pred_check_branch
        %267 = sbr.rel (%p265) target = $region32
      $region31: #{tpu_custom_call.1} parent=5 // pred_region
        // Predicated region
        $region33: #{tpu_custom_call.1} parent=31 // pred_check
          %p268 = pneg %p59
        $region34: #{tpu_custom_call.1} parent=31 // pred_check_branch
          %270 = sbr.rel (%p268) target = $region36
        $region35: #{tpu_custom_call.1} parent=31 // pred_region
          %s271 = sand.u32 %s49, 1
          %s272 = scalar_lea.sflag [#allocation5], %s271
          %s273 = sand.u32 %s49, 1
          %s274 = smul.addr %s273, 4
          %s275 = scalar_lea.vmem [#allocation4], %s274
          %277 = vsyncadd %s272, 0
          %s278 = sadd.s32 %s27, %s25
          %s279 = smul.addr %s278, 4
          %s280 = scalar_lea.hbm %s0, %s279
          %s282 = sshll.u32 %s280, 4
          %s283 = int_to_ptr.hbm [resolvable:$true] %s282
          %s284 = sshll.u32 %s275, 4
          %s285 = int_to_ptr.vmem [resolvable:$true] %s284
          %287 = dma.hbm_to_vmem [thread:$0]  %s283, 64, %s285, %s272
        $region36: #{tpu_custom_call.1} parent=31 // pred_fallthru
          _
      $region32: #{tpu_custom_call.1} parent=5 // pred_fallthru
        _
      %p288 = scmp.le.s32.totalorder 1, %s18
      %p289 = scmp.lt.s32.totalorder %s18, 3
      %p290 = pnand %p288, %p289
      %p291 = pneg %p290
      // Predicated region
      $region37: #{tpu_custom_call.1} parent=5 // pred_check
        _
      $region38: #{tpu_custom_call.1} parent=5 // pred_check_branch
        %293 = sbr.rel (%p290) target = $region40
      $region39: #{tpu_custom_call.1} parent=5 // pred_region
        %s294 = ssub.s32 %s18, 1
        %s295 = sand.u32 %s52, 1
        %s296 = scalar_lea.sflag [#allocation5], %s295
        %s297 = sand.u32 %s52, 1
        %s298 = smul.addr %s297, 4
        %s299 = scalar_lea.vmem [#allocation4], %s298
        // Predicated region
        $region41: #{tpu_custom_call.1} parent=39 // pred_check
          %p300 = pneg %p65
        $region42: #{tpu_custom_call.1} parent=39 // pred_check_branch
          %302 = sbr.rel (%p300) target = $region44
        $region43: #{tpu_custom_call.1} parent=39 // pred_region
          %304 = dma.done %s296, 64
        $region44: #{tpu_custom_call.1} parent=39 // pred_fallthru
          _
        // Predicated region
        $region45: #{tpu_custom_call.1} parent=39 // pred_check
          %p305 = pneg %p93
        $region46: #{tpu_custom_call.1} parent=39 // pred_check_branch
          %307 = sbr.rel (%p305) target = $region48
        $region47: #{tpu_custom_call.1} parent=39 // pred_region
          %309 = dma.done [#allocation8], 1024
        $region48: #{tpu_custom_call.1} parent=39 // pred_fallthru
          _
        // Predicated region
        $region49: #{tpu_custom_call.1} parent=39 // pred_check
          %p310 = pneg %p121
        $region50: #{tpu_custom_call.1} parent=39 // pred_check_branch
          %312 = sbr.rel (%p310) target = $region52
        $region51: #{tpu_custom_call.1} parent=39 // pred_region
          %314 = dma.done [#allocation8], 1024
        $region52: #{tpu_custom_call.1} parent=39 // pred_fallthru
          _
        %s315 = sand.u32 %s52, 1
        %s316 = scalar_lea.sflag [#allocation5], %s315
        %s317 = sand.u32 %s52, 1
        %s318 = smul.addr %s317, 4
        %s319 = scalar_lea.vmem [#allocation4], %s318
        %p320 = pneg %p65
        %p321 = pneg %p62
        %p322 = pneg %p93
        %p323 = pneg %p90
        %p324 = pneg %p121
        %p325 = pneg %p118
        %p326 = scmp.lt.s32.totalorder %s29, 0
        %s327 = scalar_select %p326, %s29, 0
        %s328 = scalar_lea.vmem %s3, %s327
        %p329 = pneg %p147
        %p330 = pneg %p144
        %p331 = scmp.lt.s32.totalorder %s29, 0
        %s332 = scalar_select %p331, %s29, 0
        %s333 = scalar_lea.vmem %s4, %s332
        %p334 = pneg %p173
        %p335 = pneg %p170
        %p336 = pneg %p201
        %p337 = pneg %p198
        %s338 = sand.u32 %s188, 1
        %s339 = scalar_lea.sflag [#allocation6], %s338
        %s340 = sand.u32 %s188, 1
        %s341 = smul.addr %s340, 8
        %s342 = scalar_lea.vmem [#allocation10], %s341
        %s343 = smul.u32 16, %s30
        %s344 = smul.u32 16, %s30
        %p345 = scmp.lt.s32.totalorder %s29, 0
        %s346 = scalar_select %p345, %s29, 0
        %s347 = scalar_lea.vmem %s3, %s346
        %p348 = scmp.lt.s32.totalorder %s29, 0
        %s349 = scalar_select %p348, %s29, 0
        %s350 = scalar_lea.vmem %s4, %s349
        %p351 = scmp.eq.s32.totalorder %s30, 0
        // Predicated region
        $region53: #{tpu_custom_call.1} parent=39 // pred_check
          %p352 = pneg %p351
        $region54: #{tpu_custom_call.1} parent=39 // pred_check_branch
          %354 = sbr.rel (%p352) target = $region56
        $region55: #{tpu_custom_call.1} parent=39 // pred_region
          %v355 = vld [vmem:[%s347] sm:$0x1]
          %v357 = vperm.slane %v355, 0
          %359 = vst [vmem:[#allocation2] sm:$0xff] %v357
          %v360 = vld [vmem:[%s350] sm:$0x1]
          %v362 = vperm.slane %v360, 0
          %364 = vst [vmem:[#allocation3] sm:$0xff] %v362
        $region56: #{tpu_custom_call.1} parent=39 // pred_fallthru
          _
        %v365 = vld [vmem:[%s299] sm:$0xf]
        %v366 = vld [vmem:[#allocation2] sm:$0xff]
        %v367 = vld [vmem:[#allocation7] sm:$0xf]
        %v368 = vld [vmem:[#allocation7 + $0x4] sm:$0xf]
        %v369 = vld [vmem:[#allocation7 + $0x8] sm:$0xf]
        %v370 = vld [vmem:[#allocation7 + $0xc] sm:$0xf]
        %v371 = vld [vmem:[#allocation7 + $0x10] sm:$0xf]
        %v372 = vld [vmem:[#allocation7 + $0x14] sm:$0xf]
        %v373 = vld [vmem:[#allocation7 + $0x18] sm:$0xf]
        %v374 = vld [vmem:[#allocation7 + $0x1c] sm:$0xf]
        %v375 = vld [vmem:[#allocation7 + $0x20] sm:$0xf]
        %v376 = vld [vmem:[#allocation7 + $0x24] sm:$0xf]
        %v377 = vld [vmem:[#allocation7 + $0x28] sm:$0xf]
        %v378 = vld [vmem:[#allocation7 + $0x2c] sm:$0xf]
        %v379 = vld [vmem:[#allocation7 + $0x30] sm:$0xf]
        %v380 = vld [vmem:[#allocation7 + $0x34] sm:$0xf]
        %v381 = vld [vmem:[#allocation7 + $0x38] sm:$0xf]
        %v382 = vld [vmem:[#allocation7 + $0x3c] sm:$0xf]
        %v399 = vunpack.c.l.b16 %v367
        %v400 = vunpack.c.l.b16 %v368
        %v401 = vunpack.c.l.b16 %v369
        %v402 = vunpack.c.l.b16 %v370
        %v403 = vunpack.c.l.b16 %v371
        %v404 = vunpack.c.l.b16 %v372
        %v405 = vunpack.c.l.b16 %v373
        %v406 = vunpack.c.l.b16 %v374
        %v407 = vunpack.c.l.b16 %v375
        %v408 = vunpack.c.l.b16 %v376
        %v409 = vunpack.c.l.b16 %v377
        %v410 = vunpack.c.l.b16 %v378
        %v411 = vunpack.c.l.b16 %v379
        %v412 = vunpack.c.l.b16 %v380
        %v413 = vunpack.c.l.b16 %v381
        %v414 = vunpack.c.l.b16 %v382
        %v415 = vpack.c.b16 %v400, %v399
        %v416 = vpack.c.b16 %v402, %v401
        %v417 = vpack.c.b16 %v404, %v403
        %v418 = vpack.c.b16 %v406, %v405
        %v419 = vpack.c.b16 %v408, %v407
        %v420 = vpack.c.b16 %v410, %v409
        %v421 = vpack.c.b16 %v412, %v411
        %v422 = vpack.c.b16 %v414, %v413
        %431 = vmatpush.bf16.msra.mxu0 %v422
        %432 = vmatpush.bf16.msra.mxu0 %v421
        %433 = vmatpush.bf16.msra.mxu0 %v420
        %434 = vmatpush.bf16.msra.mxu0 %v419
        %435 = vmatpush.bf16.msra.mxu0 %v418
        %436 = vmatpush.bf16.msra.mxu0 %v417
        %437 = vmatpush.bf16.msra.mxu0 %v416
        %438 = vmatpush.bf16.msra.mxu0 %v415
        %439 = vmatmul.bf16.gmra.mxu0 %v365
        %v440 = vpop.f32.mrf.mxu0
        %v441 = vadd.f32 0.0, %v440
        %v442 = vpop.f32.mrf.mxu0
        %443 = vdwg.mxu0
        %v444 = vadd.f32 %v366, %v441
        %445 = vst [vmem:[#allocation2] sm:$0xff] %v444
        %v446 = vld [vmem:[#allocation3] sm:$0xff]
        %v447 = vld [vmem:[#allocation9] sm:$0xf]
        %v448 = vld [vmem:[#allocation9 + $0x4] sm:$0xf]
        %v449 = vld [vmem:[#allocation9 + $0x8] sm:$0xf]
        %v450 = vld [vmem:[#allocation9 + $0xc] sm:$0xf]
        %v451 = vld [vmem:[#allocation9 + $0x10] sm:$0xf]
        %v452 = vld [vmem:[#allocation9 + $0x14] sm:$0xf]
        %v453 = vld [vmem:[#allocation9 + $0x18] sm:$0xf]
        %v454 = vld [vmem:[#allocation9 + $0x1c] sm:$0xf]
        %v455 = vld [vmem:[#allocation9 + $0x20] sm:$0xf]
        %v456 = vld [vmem:[#allocation9 + $0x24] sm:$0xf]
        %v457 = vld [vmem:[#allocation9 + $0x28] sm:$0xf]
        %v458 = vld [vmem:[#allocation9 + $0x2c] sm:$0xf]
        %v459 = vld [vmem:[#allocation9 + $0x30] sm:$0xf]
        %v460 = vld [vmem:[#allocation9 + $0x34] sm:$0xf]
        %v461 = vld [vmem:[#allocation9 + $0x38] sm:$0xf]
        %v462 = vld [vmem:[#allocation9 + $0x3c] sm:$0xf]
        %v479 = vunpack.c.l.b16 %v447
        %v480 = vunpack.c.l.b16 %v448
        %v481 = vunpack.c.l.b16 %v449
        %v482 = vunpack.c.l.b16 %v450
        %v483 = vunpack.c.l.b16 %v451
        %v484 = vunpack.c.l.b16 %v452
        %v485 = vunpack.c.l.b16 %v453
        %v486 = vunpack.c.l.b16 %v454
        %v487 = vunpack.c.l.b16 %v455
        %v488 = vunpack.c.l.b16 %v456
        %v489 = vunpack.c.l.b16 %v457
        %v490 = vunpack.c.l.b16 %v458
        %v491 = vunpack.c.l.b16 %v459
        %v492 = vunpack.c.l.b16 %v460
        %v493 = vunpack.c.l.b16 %v461
        %v494 = vunpack.c.l.b16 %v462
        %v495 = vpack.c.b16 %v480, %v479
        %v496 = vpack.c.b16 %v482, %v481
        %v497 = vpack.c.b16 %v484, %v483
        %v498 = vpack.c.b16 %v486, %v485
        %v499 = vpack.c.b16 %v488, %v487
        %v500 = vpack.c.b16 %v490, %v489
        %v501 = vpack.c.b16 %v492, %v491
        %v502 = vpack.c.b16 %v494, %v493
        %511 = vmatpush.bf16.msra.mxu0 %v502
        %512 = vmatpush.bf16.msra.mxu0 %v501
        %513 = vmatpush.bf16.msra.mxu0 %v500
        %514 = vmatpush.bf16.msra.mxu0 %v499
        %515 = vmatpush.bf16.msra.mxu0 %v498
        %516 = vmatpush.bf16.msra.mxu0 %v497
        %517 = vmatpush.bf16.msra.mxu0 %v496
        %518 = vmatpush.bf16.msra.mxu0 %v495
        %519 = vmatmul.bf16.gmra.mxu0 %v365
        %v520 = vpop.f32.mrf.mxu0
        %v521 = vadd.f32 0.0, %v520
        %v522 = vpop.f32.mrf.mxu0
        %523 = vdwg.mxu0
        %v524 = vadd.f32 %v446, %v521
        %525 = vst [vmem:[#allocation3] sm:$0xff] %v524
        // Predicated region
        $region57: #{tpu_custom_call.1} parent=39 // pred_check
          %p526 = pneg %p351
        $region58: #{tpu_custom_call.1} parent=39 // pred_check_branch
          %528 = sbr.rel (%p526) target = $region60
        $region59: #{tpu_custom_call.1} parent=39 // pred_region
          %v529 = vld [vmem:[#allocation2] sm:$0xff]
          %v530 = vld [vmem:[#allocation3] sm:$0xff]
          %v531 = vmul.f32 %v529, 0.5
          %v532 = vtanh.pop %v531
          %v533 = vadd.f32 %v532, 1.0
          %v534 = vmul.f32 %v533, 0.5
          %v535 = vtanh.pop %v530
          %v536 = vmul.f32 %v535, %v534
          %537 = vst [vmem:[%s342] sm:$0xff] %v536
        $region60: #{tpu_custom_call.1} parent=39 // pred_fallthru
          _
        %s538 = sand.u32 %s188, 1
        %s539 = scalar_lea.sflag [#allocation6], %s538
        %s540 = sand.u32 %s188, 1
        %s541 = smul.addr %s540, 8
        %s542 = scalar_lea.vmem [#allocation10], %s541
        // Predicated region
        $region61: #{tpu_custom_call.1} parent=39 // pred_check
          %p543 = pneg %p198
        $region62: #{tpu_custom_call.1} parent=39 // pred_check_branch
          %545 = sbr.rel (%p543) target = $region64
        $region63: #{tpu_custom_call.1} parent=39 // pred_region
          %547 = vsyncadd %s539, 0
          %s548 = sadd.s32 %s29, %s28
          %s549 = smul.addr %s548, 8
          %s550 = scalar_lea.hbm %s5, %s549
          %s552 = sshll.u32 %s542, 4
          %s553 = int_to_ptr.vmem [resolvable:$true] %s552
          %s554 = sshll.u32 %s550, 4
          %s555 = int_to_ptr.hbm [resolvable:$true] %s554
          %557 = dma.vmem_to_hbm [thread:$0]  %s553, 128, %s555, %s539
        $region64: #{tpu_custom_call.1} parent=39 // pred_fallthru
          _
      $region40: #{tpu_custom_call.1} parent=5 // pred_fallthru
        _
      %p558 = scmp.le.s32.totalorder 2, %s18
      // Predicated region
      $region65: #{tpu_custom_call.1} parent=5 // pred_check
        %p559 = pneg %p558
      $region66: #{tpu_custom_call.1} parent=5 // pred_check_branch
        %561 = sbr.rel (%p559) target = $region68
      $region67: #{tpu_custom_call.1} parent=5 // pred_region
        %s562 = ssub.s32 %s18, 2
        // Predicated region
        $region69: #{tpu_custom_call.1} parent=67 // pred_check
          %p563 = pneg %p204
        $region70: #{tpu_custom_call.1} parent=67 // pred_check_branch
          %565 = sbr.rel (%p563) target = $region72
        $region71: #{tpu_custom_call.1} parent=67 // pred_region
          %s566 = sand.u32 %s189, 1
          %s567 = scalar_lea.sflag [#allocation6], %s566
          %s568 = sand.u32 %s189, 1
          %s569 = smul.addr %s568, 8
          %s570 = scalar_lea.vmem [#allocation10], %s569
          %572 = dma.done %s567, 128
        $region72: #{tpu_custom_call.1} parent=67 // pred_fallthru
          _
      $region68: #{tpu_custom_call.1} parent=5 // pred_fallthru
        _
    $region6: #{tpu_custom_call.1} parent=1 // loop_footer
      %s22 = sadd.s32 1, %s18
    $region7: #{tpu_custom_call.1} parent=1 // loop_footer_branch
      %17 = sbr.rel target = $region3
    $region8: #{tpu_custom_call.1} parent=1 // loop_exit
      _
    %573 = vsyncpa [#allocation5], 1
    %s574 = scalar_lea.sflag [#allocation5], 1
    %575 = vsyncpa %s574, 1
    %576 = vsyncpa [#allocation8], 1
    %577 = vsyncpa [#allocation6], 1
    %s578 = scalar_lea.sflag [#allocation6], 1
    %579 = vsyncpa %s578, 1

</llo_original>
